<compile_context>
chip_gen: v6e
topology: v6e:2x2x1
jax: 0.10.0
libtpu: 0.0.40
codegen_flags: <defaults>
</compile_context>

<pallas_src>
import jax
import jax.numpy as jnp
from jax.experimental import pallas as pl
from jax.experimental.pallas import tpu as pltpu

_LANE = 128   # lane width
_D_PAD = 16   # 13 features zero-padded to 16 (two f32 vregs on sublanes)


def _logreg_kernel(xt_ref, wt_ref, b_ref, o_ref):
    # xt_ref: (D_pad, bb) f32 VMEM  -- features on sublanes, batch on lanes
    # wt_ref: (D_pad, 1)  f32 VMEM  -- resident weight column (broadcast on lanes)
    # b_ref : (1,)        f32 SMEM  -- scalar bias
    # o_ref : (1, bb)     f32 VMEM  -- lane-dense output row
    z = jnp.sum(xt_ref[...] * wt_ref[...], axis=0, keepdims=True) + b_ref[0]
    o_ref[...] = jax.nn.sigmoid(z)  # EUP transcendental, f32 throughout


def linear_regression_forward(x, weight, bias, *, block_b=65536):
    """Forward pass of LinearRegression.

    x:      (B, D) f32
    weight: (1, D) f32  -- PyTorch nn.Linear weight layout
    bias:   (1,)   f32  -- scalar bias, routed through SMEM
    """
    B, D = x.shape
    assert weight.shape[0] == 1 and weight.shape[1] == D
    assert D <= _D_PAD
    # block_b must be lane-aligned.
    block_b = max(_LANE, (block_b // _LANE) * _LANE)

    # Pad batch to a lane multiple, pick the block, then pad batch to a block
    # multiple so the grid always covers whole tiles (no giant fallback tile).
    b_lane = ((B + _LANE - 1) // _LANE) * _LANE
    bb = min(block_b, b_lane)
    b_pad = ((b_lane + bb - 1) // bb) * bb
    grid = (b_pad // bb,)

    # One-time wrapper transpose / zero-pad into the feature-major layout.
    xt = jnp.zeros((_D_PAD, b_pad), jnp.float32).at[:D, :B].set(x.T)
    wt = jnp.zeros((_D_PAD, 1), jnp.float32).at[:D, :].set(weight.T)

    out_row = pl.pallas_call(
        _logreg_kernel,
        out_shape=jax.ShapeDtypeStruct((1, b_pad), jnp.float32),
        grid=grid,
        in_specs=[
            pl.BlockSpec((_D_PAD, bb), lambda i: (0, i)),   # x: tiled over batch
            pl.BlockSpec((_D_PAD, 1), lambda i: (0, 0)),    # weight: resident
            pl.BlockSpec(memory_space=pltpu.SMEM),          # bias: scalar in SMEM
        ],
        out_specs=pl.BlockSpec((1, bb), lambda i: (0, i)),  # lane-dense output
        compiler_params=pltpu.CompilerParams(
            dimension_semantics=("parallel",)),             # shard batch across TCs
    )(xt, wt, bias)

    # Drop padded tail columns, restore (B, 1).
    return out_row[0, :B].reshape(B, 1)


if __name__ == "__main__":
    input_dim, output_dim = 13, 1
    batch = 8

    key = jax.random.PRNGKey(0)
    kx, kw, kb = jax.random.split(key, 3)

    # Deterministic parameter init (PyTorch Linear default: U(-1/sqrt(D), 1/sqrt(D)))
    bound = 1.0 / jnp.sqrt(float(input_dim))
    weight = jax.random.uniform(kw, (output_dim, input_dim),
                                minval=-bound, maxval=bound, dtype=jnp.float32)
    bias = jax.random.uniform(kb, (output_dim,),
                              minval=-bound, maxval=bound, dtype=jnp.float32)

    x = jax.random.normal(kx, (batch, input_dim), dtype=jnp.float32)

    out = linear_regression_forward(x, weight, bias)
    out = jax.block_until_ready(out)

    # Reference check in plain JAX
    ref = jax.nn.sigmoid(x @ weight.T + bias)
    assert out.shape == (batch, output_dim)
    assert jnp.allclose(out, ref, atol=1e-6, rtol=1e-6)

    # Second check: non-lane-multiple batch exercising the pad/slice path.
    x2 = jax.random.normal(jax.random.PRNGKey(1), (300, input_dim), dtype=jnp.float32)
    out2 = jax.block_until_ready(linear_regression_forward(x2, weight, bias, block_b=128))
    ref2 = jax.nn.sigmoid(x2 @ weight.T + bias)
    assert out2.shape == (300, output_dim)
    assert jnp.allclose(out2, ref2, atol=1e-6, rtol=1e-6)

    print("KERNEL_OK")
</pallas_src>

<mosaic_0001>
module attributes {stable_mosaic.version = 11 : i64} {
  func.func @_logreg_kernel(%arg0: i32, %arg1: memref<16x128xf32, #tpu.memory_space<vmem>>, %arg2: memref<16x1xf32, #tpu.memory_space<vmem>>, %arg3: memref<1xf32, #tpu.memory_space<smem>>, %arg4: memref<1x128xf32, #tpu.memory_space<vmem>>) attributes {dimension_semantics = [#tpu.dimension_semantics<parallel>], iteration_bounds = array<i64: 1>, scalar_prefetch = 0 : i64, scratch_operands = 0 : i64, tpu.core_type = #tpu.core_type<tc>, window_params = [{transform_indices = @transform_0, window_bounds = array<i64: 16, 128>}, {pipeline_mode = #tpu.pipeline_mode<synchronous>, transform_indices = @transform_1, window_bounds = array<i64: 16, 1>}, {transform_indices = @transform_2, window_bounds = array<i64: 1>}, {transform_indices = @transform_3, window_bounds = array<i64: 1, 128>}]} {
    %c0 = arith.constant 0 : index
    %c0_0 = arith.constant 0 : index
    %0 = vector.load %arg1[%c0, %c0_0] : memref<16x128xf32, #tpu.memory_space<vmem>>, vector<16x128xf32>
    %c0_1 = arith.constant 0 : index
    %c0_2 = arith.constant 0 : index
    %1 = vector.load %arg2[%c0_1, %c0_2] : memref<16x1xf32, #tpu.memory_space<vmem>>, vector<16x1xf32>
    %2 = vector.broadcast %1 : vector<16x1xf32> to vector<16x128xf32>
    %3 = arith.mulf %0, %2 : vector<16x128xf32>
    %cst = arith.constant dense<0.000000e+00> : vector<128xf32>
    %4 = vector.multi_reduction <add>, %3, %cst [0] : vector<16x128xf32> to vector<128xf32>
    %5 = vector.shape_cast %4 : vector<128xf32> to vector<1x128xf32>
    %c0_3 = arith.constant 0 : index
    %6 = memref.load %arg3[%c0_3] : memref<1xf32, #tpu.memory_space<smem>>
    %7 = vector.broadcast %6 : f32 to vector<1x128xf32>
    %8 = arith.addf %5, %7 : vector<1x128xf32>
    %9 = arith.negf %8 : vector<1x128xf32>
    %10 = math.exp %9 : vector<1x128xf32>
    %cst_4 = arith.constant 1.000000e+00 : f32
    %11 = vector.broadcast %cst_4 : f32 to vector<1x128xf32>
    %12 = arith.addf %11, %10 : vector<1x128xf32>
    %13 = arith.divf %11, %12 : vector<1x128xf32>
    %c0_5 = arith.constant 0 : index
    %c0_6 = arith.constant 0 : index
    %14 = vector.load %arg4[%c0_5, %c0_6] : memref<1x128xf32, #tpu.memory_space<vmem>>, vector<1x128xf32>
    tpu.vector_store %arg4[%c0_5, %c0_6], %13 {strides = array<i32>} : memref<1x128xf32, #tpu.memory_space<vmem>>, vector<1x128xf32>,
    return
  }
  func.func @transform_0(%arg0: i32) -> (i32, i32) {
    %c0_i32 = arith.constant 0 : i32
    %c0_i32_0 = arith.constant 0 : i32
    return %c0_i32, %arg0 : i32, i32
  }
  func.func @transform_1(%arg0: i32) -> (i32, i32) {
    %c0_i32 = arith.constant 0 : i32
    %c0_i32_0 = arith.constant 0 : i32
    %c0_i32_1 = arith.constant 0 : i32
    return %c0_i32, %c0_i32_0 : i32, i32
  }
  func.func @transform_2(%arg0: i32) -> i32 {
    %c0_i32 = arith.constant 0 : i32
    %c0_i32_0 = arith.constant 0 : i32
    return %c0_i32 : i32
  }
  func.func @transform_3(%arg0: i32) -> (i32, i32) {
    %c0_i32 = arith.constant 0 : i32
    %c0_i32_0 = arith.constant 0 : i32
    return %c0_i32, %arg0 : i32, i32
  }
}

</mosaic_0001>

<llo_original>
// kernel: tpu_custom_call.1
$region0: #{tpu_custom_call.1}
  #allocation0 [shape = 'u32[]', space=smem, size = 0x4, offset = 0x4, fixed_abs, tag = 'smem constant byte address 0x4 - core index']
  #allocation1 [shape = 'u32[144,128]{1,0:T(1,128)}', space=vmem, size = 0x12000, scoped, tag = 'internal scratch']
  #allocation2 [shape = 'f32[1]{0:T(128)S(6)}', space=smem, size = 0x200, scoped, tag = 'scoped memory for tpu_custom_call.1']
  %s0 = inlined_call_operand.vmem [shape: f32[16,128], index: 0, kind: input, shape index: {}]
  %s1 = inlined_call_operand.vmem [shape: f32[16,1], index: 1, kind: input, shape index: {}]
  %s2 = inlined_call_operand.<no memory space> [shape: f32[1], index: 2, kind: input, shape index: {}]
  %s3 = inlined_call_operand.hbm [shape: f32[1,128], index: 3, kind: output, shape index: {}]
  %s4 = sld [smem:[#allocation0]]
  $region22: #{tpu_custom_call.1} parent=0
    _
  %s6 = ssub.s32 1, %s4
  %s7 = scalar_select 0, %s6, %s4
  %8 = sst [smem:[#allocation2]] %s2
  $region1: #{tpu_custom_call.1} parent=0
    #allocation3 [shape = 'u8[512]{0}', space=vmem, size = 0x400, scoped, tag = 'output window, operand 0, single buffered']
    #allocation4 [shape = 's32[1]{0}', space=sflag, size = 0x4, scoped, tag = 'scoped memory for tpu_custom_call.1']
    %9 = vsyncpa [#allocation4], 0
    // Predicated region
    $region2: #{tpu_custom_call.1} parent=1 // pred_check
      _
    $region3: #{tpu_custom_call.1} parent=1 // pred_check_branch
      %11 = sbr.rel (0) target = $region5
    $region4: #{tpu_custom_call.1} parent=1 // pred_region
      _
    $region5: #{tpu_custom_call.1} parent=1 // pred_fallthru
      _
    // Predicated region
    $region6: #{tpu_custom_call.1} parent=1 // pred_check
      _
    $region7: #{tpu_custom_call.1} parent=1 // pred_check_branch
      %13 = sbr.rel (0) target = $region9
    $region8: #{tpu_custom_call.1} parent=1 // pred_region
      _
    $region9: #{tpu_custom_call.1} parent=1 // pred_fallthru
      _
    // Predicated region
    $region10: #{tpu_custom_call.1} parent=1 // pred_check
      _
    $region11: #{tpu_custom_call.1} parent=1 // pred_check_branch
      %15 = sbr.rel (0) target = $region13
    $region12: #{tpu_custom_call.1} parent=1 // pred_region
      _
    $region13: #{tpu_custom_call.1} parent=1 // pred_fallthru
      _
    %v16 = vld [vmem:[%s0] sm:$0xff]
    %v17 = vld [vmem:[%s0 + $0x8] sm:$0xff]
    %v18 = vld [vmem:[%s1] sm:$0xff]
    %v19 = vld [vmem:[%s1 + $0x8] sm:$0xff]
    %21 = vset.pattern.permute.xlu0 0
    %22 = vperm.xlu0 %21, %v18
    %v23 = vpop.permute.xlu0 %22
    %26 = vset.pattern.permute.xlu0 0
    %27 = vperm.xlu0 %26, %v19
    %v28 = vpop.permute.xlu0 %27
    %v30 = vmul.f32 %v16, %v23
    %v31 = vmul.f32 %v17, %v28
    %v32 = vadd.f32 %v30, %v31
    %v33 = vrot.slane %v32, 4
    %v34 = vadd.f32 %v32, %v33
    %v35 = vrot.slane %v34, 2
    %v36 = vadd.f32 %v34, %v35
    %v37 = vrot.slane %v36, 1
    %v38 = vadd.f32 %v36, %v37
    %s39 = sld [smem:[#allocation2]]
    %v40 = vstv %s39
    %v41 = vadd.f32 %v38, %v40
    %v42 = vxor.u32 %v41, 2147483648
    %v43 = vmul.f32 %v42, 1.442695
    %v44 = vpow.pop %v43
    %v45 = vadd.f32 %v44, 1.0
    %v46 = vrcp.pop %v45
    %v47 = vmul.f32 1.0, %v46
    %48 = vst [vmem:[#allocation3] sm:$0x1] %v47
    // Predicated region
    $region14: #{tpu_custom_call.1} parent=1 // pred_check
      _
    $region15: #{tpu_custom_call.1} parent=1 // pred_check_branch
      %50 = sbr.rel (0) target = $region17
    $region16: #{tpu_custom_call.1} parent=1 // pred_region
      %s52 = ssub.s32 16, 16
      %53 = vsyncadd [#allocation4], %s52
      %s55 = sshll.u32 [#allocation3], 4
      %s56 = int_to_ptr.vmem [resolvable:$true] %s55
      %58 = dma.vmem_to_hbm [thread:$0]  %s56, 16, %s3, [#allocation4]
    $region17: #{tpu_custom_call.1} parent=1 // pred_fallthru
      _
    // Predicated region
    $region18: #{tpu_custom_call.1} parent=1 // pred_check
      _
    $region19: #{tpu_custom_call.1} parent=1 // pred_check_branch
      %60 = sbr.rel (0) target = $region21
    $region20: #{tpu_custom_call.1} parent=1 // pred_region
      %61 = dma.done [#allocation4], 16
    $region21: #{tpu_custom_call.1} parent=1 // pred_fallthru
      _
    %62 = vsyncpa [#allocation4], 1

</llo_original>
